<compile_context>
chip_gen: v5e
topology: v5e:2x2
jax: 0.10.0
libtpu: 0.0.40
codegen_flags: <defaults>
</compile_context>

<pallas_src>
import functools

import jax
import jax.numpy as jnp
from jax.experimental import pallas as pl
from jax.experimental.pallas import tpu as pltpu

_LANE = 128
_VMEM_BUDGET = 40 << 20   # conservative cap: fits v7x 64 MiB physical VMEM


def _round_up(n, m):
    return ((n + m - 1) // m) * m


def _mlp_kernel(x_ref, w1_ref, b1_ref, w2_ref, b2_ref, w3_ref, b3_ref, o_ref):
    # NOTE: every output row depends only on the matching input row (no
    # cross-row reduction inside a block), so ragged last batch blocks
    # (grid = cdiv(B, tb), no wrapper padding) are safe: OOB-read garbage rows
    # only feed output rows that Pallas masks on store.
    # Layer 1: Linear(128, 128) + ReLU   (f32 accumulate, f32 bias)
    h1 = jnp.dot(x_ref[...], w1_ref[...], preferred_element_type=jnp.float32)
    h1 = jnp.maximum(h1 + b1_ref[...], 0.0)
    # Layer 2: Linear(128, 64 zero-padded to 128) + ReLU (padded lanes stay 0)
    h2 = jnp.dot(h1.astype(w2_ref.dtype), w2_ref[...],
                 preferred_element_type=jnp.float32)
    h2 = jnp.maximum(h2 + b2_ref[...], 0.0)
    # Layer 3: Linear(128-padded, out_pad)   (no activation)
    h3 = jnp.dot(h2.astype(w3_ref.dtype), w3_ref[...],
                 preferred_element_type=jnp.float32)
    o_ref[...] = (h3 + b3_ref[...]).astype(o_ref.dtype)


@functools.partial(jax.jit, static_argnames=("out_dim", "block_b",
                                             "compute_dtype", "out_dtype"))
def password_decoder_forward(x, params, out_dim, *, block_b=8192,
                             compute_dtype=jnp.bfloat16,
                             out_dtype=jnp.float32):
    """x: (B, 128). params: padded weights from init_params(). -> (B, out_dim)."""
    w1, b1 = params["w1"], params["b1"]
    w2, b2 = params["w2"], params["b2"]
    w3, b3 = params["w3"], params["b3"]
    out_pad = w3.shape[1]

    # Activations/weights in compute_dtype; biases stay f32 (added to the f32
    # accumulator in-kernel, so no avoidable bf16 rounding of the bias).
    x = x.astype(compute_dtype)
    w1, w2, w3 = (w.astype(compute_dtype) for w in (w1, w2, w3))

    B = x.shape[0]
    itemsize = jnp.dtype(compute_dtype).itemsize
    sublane = 8 * (4 // itemsize)        # 8 rows f32, 16 rows bf16, 32 int8/fp8

    # Batch tile: large (amortize per-step overhead), split >= 2 ways so both
    # v7x TensorCores get work, rounded to the dtype sublane packing.
    tb = max(sublane, min(block_b, _round_up(pl.cdiv(B, 2), sublane)))

    def vmem_need(t):
        return (2 * t * 128 * itemsize                         # x tile x2 (pipelined)
                + 2 * t * out_pad * itemsize                   # out tile x2
                + 2 * (128 * 128 * 2 + 128 * out_pad) * itemsize   # weights (resident)
                + 2 * (128 + 128 + out_pad) * 4)               # biases (f32)

    while tb > sublane and vmem_need(tb) > _VMEM_BUDGET:
        tb = max(sublane, _round_up(tb // 2, sublane))

    # No jnp.pad of x: Pallas handles the ragged last batch block.
    grid = (pl.cdiv(B, tb),)

    const = lambda i: (0, 0)
    cost = pl.CostEstimate(
        flops=2 * B * (128 * 128 + 128 * 128 + 128 * out_pad),
        transcendentals=0,
        bytes_accessed=(B * 128 * itemsize
                        + (128 * 128 * 2 + 128 * out_pad) * itemsize
                        + (128 + 128 + out_pad) * 4
                        + B * out_pad * itemsize))

    out_padded = pl.pallas_call(
        _mlp_kernel,
        out_shape=jax.ShapeDtypeStruct((B, out_pad), compute_dtype),
        grid=grid,
        in_specs=[
            pl.BlockSpec((tb, 128), lambda i: (i, 0)),        # x tile (pipelined)
            pl.BlockSpec((128, 128), const),                  # w1 (resident in VMEM)
            pl.BlockSpec((1, 128), const),                    # b1 (f32)
            pl.BlockSpec((128, 128), const),                  # w2 (64 padded to 128)
            pl.BlockSpec((1, 128), const),                    # b2 (f32, padded)
            pl.BlockSpec((128, out_pad), const),              # w3 (padded)
            pl.BlockSpec((1, out_pad), const),                # b3 (f32, padded)
        ],
        out_specs=pl.BlockSpec((tb, out_pad), lambda i: (i, 0)),
        compiler_params=pltpu.CompilerParams(
            dimension_semantics=("parallel",),
            vmem_limit_bytes=int(max(vmem_need(tb) + (4 << 20), 16 << 20))),
        cost_estimate=cost,
    )(x, w1, b1, w2, b2, w3, b3)

    # Only the useful columns leave in out_dtype; XLA fuses slice + cast.
    return out_padded[:, :out_dim].astype(out_dtype)


def init_params(key, output_dim):
    """nn.Linear-style init U(-1/sqrt(fan_in), 1/sqrt(fan_in)).
    Weights stored (in_features, out_features); the 64-wide hidden layer and
    the output dim are zero-padded to MXU/lane-friendly sizes (128 multiples).
    ReLU(0 + 0) = 0 and zero rows of w3 contribute nothing, so results are
    identical to the unpadded network."""
    ks = jax.random.split(key, 6)

    def lin(kw, kb, fan_in, fan_out):
        bound = 1.0 / jnp.sqrt(fan_in)
        w = jax.random.uniform(kw, (fan_in, fan_out), jnp.float32, -bound, bound)
        b = jax.random.uniform(kb, (1, fan_out), jnp.float32, -bound, bound)
        return w, b

    out_pad = _round_up(max(output_dim, 1), _LANE)

    w1, b1 = lin(ks[0], ks[1], 128, 128)
    w2, b2 = lin(ks[2], ks[3], 128, 64)
    w3, b3 = lin(ks[4], ks[5], 64, output_dim)

    w2p = jnp.zeros((128, 128), jnp.float32).at[:, :64].set(w2)
    b2p = jnp.zeros((1, 128), jnp.float32).at[:, :64].set(b2)
    w3p = jnp.zeros((128, out_pad), jnp.float32).at[:64, :output_dim].set(w3)
    b3p = jnp.zeros((1, out_pad), jnp.float32).at[:, :output_dim].set(b3)

    return {"w1": w1, "b1": b1, "w2": w2p, "b2": b2p, "w3": w3p, "b3": b3p}


if __name__ == "__main__":
    key = jax.random.PRNGKey(0)
    k_x, k_p = jax.random.split(key)

    output_dim = 32          # e.g. number of password characters/classes
    batch = 8
    x = jax.random.normal(k_x, (batch, 128), jnp.float32)
    params = init_params(k_p, output_dim)

    # Pure-JAX f32 reference using the unpadded slices of the padded weights.
    w2u, b2u = params["w2"][:, :64], params["b2"][:, :64]
    w3u, b3u = params["w3"][:64, :output_dim], params["b3"][:, :output_dim]

    def ref_fn(xx):
        h = jnp.maximum(xx @ params["w1"] + params["b1"], 0.0)
        h = jnp.maximum(h @ w2u + b2u, 0.0)
        return h @ w3u + b3u

    # Default fast path: bf16 weights/activations, f32 accumulation.
    out = jax.block_until_ready(password_decoder_forward(x, params, output_dim))
    assert out.shape == (batch, output_dim) and out.dtype == jnp.float32
    assert jnp.allclose(out, ref_fn(x), atol=5e-2, rtol=5e-2)

    # Full-f32 path: tight tolerance.
    out_f32 = jax.block_until_ready(
        password_decoder_forward(x, params, output_dim,
                                 compute_dtype=jnp.float32))
    assert jnp.allclose(out_f32, ref_fn(x), atol=1e-4, rtol=1e-4)

    # Ragged batch (B not a multiple of the tile): exercises the no-pad path.
    batch2 = 37
    x2 = jax.random.normal(k_x, (batch2, 128), jnp.float32)
    out2 = jax.block_until_ready(
        password_decoder_forward(x2, params, output_dim))
    assert out2.shape == (batch2, output_dim)
    assert jnp.allclose(out2, ref_fn(x2), atol=5e-2, rtol=5e-2)

    print("KERNEL_OK")
</pallas_src>

<mosaic_0001>
module attributes {stable_mosaic.version = 11 : i64} {
  func.func @_mlp_kernel(%arg0: i32, %arg1: memref<16x128xbf16, #tpu.memory_space<vmem>>, %arg2: memref<128x128xbf16, #tpu.memory_space<vmem>>, %arg3: memref<1x128xf32, #tpu.memory_space<vmem>>, %arg4: memref<128x128xbf16, #tpu.memory_space<vmem>>, %arg5: memref<1x128xf32, #tpu.memory_space<vmem>>, %arg6: memref<128x128xbf16, #tpu.memory_space<vmem>>, %arg7: memref<1x128xf32, #tpu.memory_space<vmem>>, %arg8: memref<16x128xbf16, #tpu.memory_space<vmem>>) attributes {dimension_semantics = [#tpu.dimension_semantics<parallel>], iteration_bounds = array<i64: 1>, scalar_prefetch = 0 : i64, scratch_operands = 0 : i64, tpu.core_type = #tpu.core_type<tc>, window_params = [{transform_indices = @transform_0, window_bounds = array<i64: 16, 128>}, {pipeline_mode = #tpu.pipeline_mode<synchronous>, transform_indices = @transform_1, window_bounds = array<i64: 128, 128>}, {pipeline_mode = #tpu.pipeline_mode<synchronous>, transform_indices = @transform_2, window_bounds = array<i64: 1, 128>}, {pipeline_mode = #tpu.pipeline_mode<synchronous>, transform_indices = @transform_3, window_bounds = array<i64: 128, 128>}, {pipeline_mode = #tpu.pipeline_mode<synchronous>, transform_indices = @transform_4, window_bounds = array<i64: 1, 128>}, {pipeline_mode = #tpu.pipeline_mode<synchronous>, transform_indices = @transform_5, window_bounds = array<i64: 128, 128>}, {pipeline_mode = #tpu.pipeline_mode<synchronous>, transform_indices = @transform_6, window_bounds = array<i64: 1, 128>}, {transform_indices = @transform_7, window_bounds = array<i64: 16, 128>}]} {
    %c0 = arith.constant 0 : index
    %c0_0 = arith.constant 0 : index
    %0 = vector.load %arg1[%c0, %c0_0] : memref<16x128xbf16, #tpu.memory_space<vmem>>, vector<16x128xbf16>
    %c0_1 = arith.constant 0 : index
    %c0_2 = arith.constant 0 : index
    %1 = vector.load %arg2[%c0_1, %c0_2] : memref<128x128xbf16, #tpu.memory_space<vmem>>, vector<128x128xbf16>
    %cst = arith.constant dense<0.000000e+00> : vector<16x128xf32>
    %2 = tpu.matmul %0, %1, %cst {dimension_numbers = #tpu.dot_dimension_numbers<[1], [0], [0], [1], [0, 0, 1, 1], [], []>} : vector<16x128xbf16>, vector<128x128xbf16>, vector<16x128xf32> -> vector<16x128xf32>
    %c0_3 = arith.constant 0 : index
    %c0_4 = arith.constant 0 : index
    %3 = vector.load %arg3[%c0_3, %c0_4] : memref<1x128xf32, #tpu.memory_space<vmem>>, vector<1x128xf32>
    %4 = vector.broadcast %3 : vector<1x128xf32> to vector<16x128xf32>
    %5 = arith.addf %2, %4 : vector<16x128xf32>
    %cst_5 = arith.constant 0.000000e+00 : f32
    %6 = vector.broadcast %cst_5 : f32 to vector<16x128xf32>
    %7 = arith.maximumf %5, %6 : vector<16x128xf32>
    %8 = arith.truncf %7 : vector<16x128xf32> to vector<16x128xbf16>
    %c0_6 = arith.constant 0 : index
    %c0_7 = arith.constant 0 : index
    %9 = vector.load %arg4[%c0_6, %c0_7] : memref<128x128xbf16, #tpu.memory_space<vmem>>, vector<128x128xbf16>
    %cst_8 = arith.constant dense<0.000000e+00> : vector<16x128xf32>
    %10 = tpu.matmul %8, %9, %cst_8 {dimension_numbers = #tpu.dot_dimension_numbers<[1], [0], [0], [1], [0, 0, 1, 1], [], []>} : vector<16x128xbf16>, vector<128x128xbf16>, vector<16x128xf32> -> vector<16x128xf32>
    %c0_9 = arith.constant 0 : index
    %c0_10 = arith.constant 0 : index
    %11 = vector.load %arg5[%c0_9, %c0_10] : memref<1x128xf32, #tpu.memory_space<vmem>>, vector<1x128xf32>
    %12 = vector.broadcast %11 : vector<1x128xf32> to vector<16x128xf32>
    %13 = arith.addf %10, %12 : vector<16x128xf32>
    %cst_11 = arith.constant 0.000000e+00 : f32
    %14 = vector.broadcast %cst_11 : f32 to vector<16x128xf32>
    %15 = arith.maximumf %13, %14 : vector<16x128xf32>
    %16 = arith.truncf %15 : vector<16x128xf32> to vector<16x128xbf16>
    %c0_12 = arith.constant 0 : index
    %c0_13 = arith.constant 0 : index
    %17 = vector.load %arg6[%c0_12, %c0_13] : memref<128x128xbf16, #tpu.memory_space<vmem>>, vector<128x128xbf16>
    %cst_14 = arith.constant dense<0.000000e+00> : vector<16x128xf32>
    %18 = tpu.matmul %16, %17, %cst_14 {dimension_numbers = #tpu.dot_dimension_numbers<[1], [0], [0], [1], [0, 0, 1, 1], [], []>} : vector<16x128xbf16>, vector<128x128xbf16>, vector<16x128xf32> -> vector<16x128xf32>
    %c0_15 = arith.constant 0 : index
    %c0_16 = arith.constant 0 : index
    %19 = vector.load %arg7[%c0_15, %c0_16] : memref<1x128xf32, #tpu.memory_space<vmem>>, vector<1x128xf32>
    %20 = vector.broadcast %19 : vector<1x128xf32> to vector<16x128xf32>
    %21 = arith.addf %18, %20 : vector<16x128xf32>
    %22 = arith.truncf %21 : vector<16x128xf32> to vector<16x128xbf16>
    %c0_17 = arith.constant 0 : index
    %c0_18 = arith.constant 0 : index
    %23 = vector.load %arg8[%c0_17, %c0_18] : memref<16x128xbf16, #tpu.memory_space<vmem>>, vector<16x128xbf16>
    tpu.vector_store %arg8[%c0_17, %c0_18], %22 {strides = array<i32>} : memref<16x128xbf16, #tpu.memory_space<vmem>>, vector<16x128xbf16>,
    return
  }
  func.func @transform_0(%arg0: i32) -> (i32, i32) {
    %c0_i32 = arith.constant 0 : i32
    %c0_i32_0 = arith.constant 0 : i32
    return %arg0, %c0_i32 : i32, i32
  }
  func.func @transform_1(%arg0: i32) -> (i32, i32) {
    %c0_i32 = arith.constant 0 : i32
    %c0_i32_0 = arith.constant 0 : i32
    %c0_i32_1 = arith.constant 0 : i32
    return %c0_i32, %c0_i32_0 : i32, i32
  }
  func.func @transform_2(%arg0: i32) -> (i32, i32) {
    %c0_i32 = arith.constant 0 : i32
    %c0_i32_0 = arith.constant 0 : i32
    %c0_i32_1 = arith.constant 0 : i32
    return %c0_i32, %c0_i32_0 : i32, i32
  }
  func.func @transform_3(%arg0: i32) -> (i32, i32) {
    %c0_i32 = arith.constant 0 : i32
    %c0_i32_0 = arith.constant 0 : i32
    %c0_i32_1 = arith.constant 0 : i32
    return %c0_i32, %c0_i32_0 : i32, i32
  }
  func.func @transform_4(%arg0: i32) -> (i32, i32) {
    %c0_i32 = arith.constant 0 : i32
    %c0_i32_0 = arith.constant 0 : i32
    %c0_i32_1 = arith.constant 0 : i32
    return %c0_i32, %c0_i32_0 : i32, i32
  }
  func.func @transform_5(%arg0: i32) -> (i32, i32) {
    %c0_i32 = arith.constant 0 : i32
    %c0_i32_0 = arith.constant 0 : i32
    %c0_i32_1 = arith.constant 0 : i32
    return %c0_i32, %c0_i32_0 : i32, i32
  }
  func.func @transform_6(%arg0: i32) -> (i32, i32) {
    %c0_i32 = arith.constant 0 : i32
    %c0_i32_0 = arith.constant 0 : i32
    %c0_i32_1 = arith.constant 0 : i32
    return %c0_i32, %c0_i32_0 : i32, i32
  }
  func.func @transform_7(%arg0: i32) -> (i32, i32) {
    %c0_i32 = arith.constant 0 : i32
    %c0_i32_0 = arith.constant 0 : i32
    return %arg0, %c0_i32 : i32, i32
  }
}

</mosaic_0001>

<llo_original>
// kernel: password_decoder_forward.1
$region0: #{password_decoder_forward.1}
  #allocation0 [shape = 'u32[]', space=smem, size = 0x4, offset = 0x4, fixed_abs, tag = 'smem constant byte address 0x4 - core index']
  #allocation1 [shape = 'u32[72,128]{1,0:T(1,128)}', space=vmem, size = 0x9000, scoped, tag = 'internal scratch']
  %s0 = inlined_call_operand.vmem [shape: bf16[8,128], index: 0, kind: input, shape index: {}]
  %s1 = inlined_call_operand.vmem [shape: bf16[128,128], index: 1, kind: input, shape index: {}]
  %s2 = inlined_call_operand.vmem [shape: f32[1,128], index: 2, kind: input, shape index: {}]
  %s3 = inlined_call_operand.vmem [shape: bf16[128,128], index: 3, kind: input, shape index: {}]
  %s4 = inlined_call_operand.vmem [shape: f32[1,128], index: 4, kind: input, shape index: {}]
  %s5 = inlined_call_operand.vmem [shape: bf16[128,128], index: 5, kind: input, shape index: {}]
  %s6 = inlined_call_operand.vmem [shape: f32[1,128], index: 6, kind: input, shape index: {}]
  %s7 = inlined_call_operand.vmem [shape: bf16[8,128], index: 7, kind: output, shape index: {}]
  %s8 = sld [smem:[#allocation0]]
  $region68: #{password_decoder_forward.1} parent=0
    _
  %s10 = ssub.s32 1, %s8
  %s11 = scalar_select 0, %s10, %s8
  $region1: #{password_decoder_forward.1} parent=0
    #allocation2 [shape = 'u8[4096]{0}', space=vmem, size = 0x1000, scoped, tag = 'output window, operand 0, single buffered']
    // Predicated region
    $region2: #{password_decoder_forward.1} parent=1 // pred_check
      _
    $region3: #{password_decoder_forward.1} parent=1 // pred_check_branch
      %13 = sbr.rel (0) target = $region5
    $region4: #{password_decoder_forward.1} parent=1 // pred_region
      _
    $region5: #{password_decoder_forward.1} parent=1 // pred_fallthru
      _
    // Predicated region
    $region6: #{password_decoder_forward.1} parent=1 // pred_check
      _
    $region7: #{password_decoder_forward.1} parent=1 // pred_check_branch
      %15 = sbr.rel (0) target = $region9
    $region8: #{password_decoder_forward.1} parent=1 // pred_region
      _
    $region9: #{password_decoder_forward.1} parent=1 // pred_fallthru
      _
    // Predicated region
    $region10: #{password_decoder_forward.1} parent=1 // pred_check
      _
    $region11: #{password_decoder_forward.1} parent=1 // pred_check_branch
      %17 = sbr.rel (0) target = $region13
    $region12: #{password_decoder_forward.1} parent=1 // pred_region
      _
    $region13: #{password_decoder_forward.1} parent=1 // pred_fallthru
      _
    // Predicated region
    $region14: #{password_decoder_forward.1} parent=1 // pred_check
      _
    $region15: #{password_decoder_forward.1} parent=1 // pred_check_branch
      %19 = sbr.rel (0) target = $region17
    $region16: #{password_decoder_forward.1} parent=1 // pred_region
      _
    $region17: #{password_decoder_forward.1} parent=1 // pred_fallthru
      _
    // Predicated region
    $region18: #{password_decoder_forward.1} parent=1 // pred_check
      _
    $region19: #{password_decoder_forward.1} parent=1 // pred_check_branch
      %21 = sbr.rel (0) target = $region21
    $region20: #{password_decoder_forward.1} parent=1 // pred_region
      _
    $region21: #{password_decoder_forward.1} parent=1 // pred_fallthru
      _
    // Predicated region
    $region22: #{password_decoder_forward.1} parent=1 // pred_check
      _
    $region23: #{password_decoder_forward.1} parent=1 // pred_check_branch
      %23 = sbr.rel (0) target = $region25
    $region24: #{password_decoder_forward.1} parent=1 // pred_region
      _
    $region25: #{password_decoder_forward.1} parent=1 // pred_fallthru
      _
    // Predicated region
    $region26: #{password_decoder_forward.1} parent=1 // pred_check
      _
    $region27: #{password_decoder_forward.1} parent=1 // pred_check_branch
      %25 = sbr.rel (0) target = $region29
    $region28: #{password_decoder_forward.1} parent=1 // pred_region
      _
    $region29: #{password_decoder_forward.1} parent=1 // pred_fallthru
      _
    %v26 = vld [vmem:[%s0] sm:$0xf]
    %v27 = vld [vmem:[%s0 + $0x4] sm:$0xf]
    %v28 = vld [vmem:[%s1] sm:$0xf]
    %v29 = vld [vmem:[%s1 + $0x4] sm:$0xf]
    %v30 = vld [vmem:[%s1 + $0x8] sm:$0xf]
    %v31 = vld [vmem:[%s1 + $0xc] sm:$0xf]
    %v32 = vld [vmem:[%s1 + $0x10] sm:$0xf]
    %v33 = vld [vmem:[%s1 + $0x14] sm:$0xf]
    %v34 = vld [vmem:[%s1 + $0x18] sm:$0xf]
    %v35 = vld [vmem:[%s1 + $0x1c] sm:$0xf]
    %v36 = vld [vmem:[%s1 + $0x20] sm:$0xf]
    %v37 = vld [vmem:[%s1 + $0x24] sm:$0xf]
    %v38 = vld [vmem:[%s1 + $0x28] sm:$0xf]
    %v39 = vld [vmem:[%s1 + $0x2c] sm:$0xf]
    %v40 = vld [vmem:[%s1 + $0x30] sm:$0xf]
    %v41 = vld [vmem:[%s1 + $0x34] sm:$0xf]
    %v42 = vld [vmem:[%s1 + $0x38] sm:$0xf]
    %v43 = vld [vmem:[%s1 + $0x3c] sm:$0xf]
    %v44 = vld [vmem:[%s2] sm:$0x1]
    %v46 = vperm.slane %v44, 0
    %v50 = vunpack.c.l.b16 %v26
    %v51 = vunpack.c.l.b16 %v27
    %v52 = vpack.c.b16 %v51, %v50
    %v70 = vunpack.c.l.b16 %v28
    %v71 = vunpack.c.l.b16 %v29
    %v72 = vunpack.c.l.b16 %v30
    %v73 = vunpack.c.l.b16 %v31
    %v74 = vunpack.c.l.b16 %v32
    %v75 = vunpack.c.l.b16 %v33
    %v76 = vunpack.c.l.b16 %v34
    %v77 = vunpack.c.l.b16 %v35
    %v78 = vunpack.c.l.b16 %v36
    %v79 = vunpack.c.l.b16 %v37
    %v80 = vunpack.c.l.b16 %v38
    %v81 = vunpack.c.l.b16 %v39
    %v82 = vunpack.c.l.b16 %v40
    %v83 = vunpack.c.l.b16 %v41
    %v84 = vunpack.c.l.b16 %v42
    %v85 = vunpack.c.l.b16 %v43
    %v86 = vpack.c.b16 %v71, %v70
    %v87 = vpack.c.b16 %v73, %v72
    %v88 = vpack.c.b16 %v75, %v74
    %v89 = vpack.c.b16 %v77, %v76
    %v90 = vpack.c.b16 %v79, %v78
    %v91 = vpack.c.b16 %v81, %v80
    %v92 = vpack.c.b16 %v83, %v82
    %v93 = vpack.c.b16 %v85, %v84
    %102 = vmatpush.bf16.msra.mxu0 %v93
    %103 = vmatpush.bf16.msra.mxu0 %v92
    %104 = vmatpush.bf16.msra.mxu0 %v91
    %105 = vmatpush.bf16.msra.mxu0 %v90
    %106 = vmatpush.bf16.msra.mxu0 %v89
    %107 = vmatpush.bf16.msra.mxu0 %v88
    %108 = vmatpush.bf16.msra.mxu0 %v87
    %109 = vmatpush.bf16.msra.mxu0 %v86
    %110 = vmatmul.bf16.gmra.mxu0 %v52
    %v111 = vpop.f32.mrf.mxu0
    %v112 = vadd.f32 %v46, %v111
    %v113 = vpop.f32.mrf.mxu0
    %v114 = vadd.f32 %v46, %v113
    %115 = vdwg.mxu0
    %v116 = vmax.f32 %v112, 0.0
    %v117 = vmax.f32 %v114, 0.0
    %v118 = vpack.c.bf16 %v117, %v116
    %v119 = vld [vmem:[%s3] sm:$0xf]
    %v120 = vld [vmem:[%s3 + $0x4] sm:$0xf]
    %v121 = vld [vmem:[%s3 + $0x8] sm:$0xf]
    %v122 = vld [vmem:[%s3 + $0xc] sm:$0xf]
    %v123 = vld [vmem:[%s3 + $0x10] sm:$0xf]
    %v124 = vld [vmem:[%s3 + $0x14] sm:$0xf]
    %v125 = vld [vmem:[%s3 + $0x18] sm:$0xf]
    %v126 = vld [vmem:[%s3 + $0x1c] sm:$0xf]
    %v127 = vld [vmem:[%s3 + $0x20] sm:$0xf]
    %v128 = vld [vmem:[%s3 + $0x24] sm:$0xf]
    %v129 = vld [vmem:[%s3 + $0x28] sm:$0xf]
    %v130 = vld [vmem:[%s3 + $0x2c] sm:$0xf]
    %v131 = vld [vmem:[%s3 + $0x30] sm:$0xf]
    %v132 = vld [vmem:[%s3 + $0x34] sm:$0xf]
    %v133 = vld [vmem:[%s3 + $0x38] sm:$0xf]
    %v134 = vld [vmem:[%s3 + $0x3c] sm:$0xf]
    %v135 = vld [vmem:[%s4] sm:$0x1]
    %v137 = vperm.slane %v135, 0
    %v155 = vunpack.c.l.b16 %v119
    %v156 = vunpack.c.l.b16 %v120
    %v157 = vunpack.c.l.b16 %v121
    %v158 = vunpack.c.l.b16 %v122
    %v159 = vunpack.c.l.b16 %v123
    %v160 = vunpack.c.l.b16 %v124
    %v161 = vunpack.c.l.b16 %v125
    %v162 = vunpack.c.l.b16 %v126
    %v163 = vunpack.c.l.b16 %v127
    %v164 = vunpack.c.l.b16 %v128
    %v165 = vunpack.c.l.b16 %v129
    %v166 = vunpack.c.l.b16 %v130
    %v167 = vunpack.c.l.b16 %v131
    %v168 = vunpack.c.l.b16 %v132
    %v169 = vunpack.c.l.b16 %v133
    %v170 = vunpack.c.l.b16 %v134
    %v171 = vpack.c.b16 %v156, %v155
    %v172 = vpack.c.b16 %v158, %v157
    %v173 = vpack.c.b16 %v160, %v159
    %v174 = vpack.c.b16 %v162, %v161
    %v175 = vpack.c.b16 %v164, %v163
    %v176 = vpack.c.b16 %v166, %v165
    %v177 = vpack.c.b16 %v168, %v167
    %v178 = vpack.c.b16 %v170, %v169
    %187 = vmatpush.bf16.msra.mxu0 %v178
    %188 = vmatpush.bf16.msra.mxu0 %v177
    %189 = vmatpush.bf16.msra.mxu0 %v176
    %190 = vmatpush.bf16.msra.mxu0 %v175
    %191 = vmatpush.bf16.msra.mxu0 %v174
    %192 = vmatpush.bf16.msra.mxu0 %v173
    %193 = vmatpush.bf16.msra.mxu0 %v172
    %194 = vmatpush.bf16.msra.mxu0 %v171
    %195 = vmatmul.bf16.gmra.mxu0 %v118
    %v196 = vpop.f32.mrf.mxu0
    %v197 = vadd.f32 %v137, %v196
    %v198 = vpop.f32.mrf.mxu0
    %v199 = vadd.f32 %v137, %v198
    %200 = vdwg.mxu0
    %v201 = vmax.f32 %v197, 0.0
    %v202 = vmax.f32 %v199, 0.0
    %v203 = vpack.c.bf16 %v202, %v201
    %v204 = vld [vmem:[%s5] sm:$0xf]
    %v205 = vld [vmem:[%s5 + $0x4] sm:$0xf]
    %v206 = vld [vmem:[%s5 + $0x8] sm:$0xf]
    %v207 = vld [vmem:[%s5 + $0xc] sm:$0xf]
    %v208 = vld [vmem:[%s5 + $0x10] sm:$0xf]
    %v209 = vld [vmem:[%s5 + $0x14] sm:$0xf]
    %v210 = vld [vmem:[%s5 + $0x18] sm:$0xf]
    %v211 = vld [vmem:[%s5 + $0x1c] sm:$0xf]
    %v212 = vld [vmem:[%s5 + $0x20] sm:$0xf]
    %v213 = vld [vmem:[%s5 + $0x24] sm:$0xf]
    %v214 = vld [vmem:[%s5 + $0x28] sm:$0xf]
    %v215 = vld [vmem:[%s5 + $0x2c] sm:$0xf]
    %v216 = vld [vmem:[%s5 + $0x30] sm:$0xf]
    %v217 = vld [vmem:[%s5 + $0x34] sm:$0xf]
    %v218 = vld [vmem:[%s5 + $0x38] sm:$0xf]
    %v219 = vld [vmem:[%s5 + $0x3c] sm:$0xf]
    %v220 = vld [vmem:[%s6] sm:$0x1]
    %v222 = vperm.slane %v220, 0
    %v240 = vunpack.c.l.b16 %v204
    %v241 = vunpack.c.l.b16 %v205
    %v242 = vunpack.c.l.b16 %v206
    %v243 = vunpack.c.l.b16 %v207
    %v244 = vunpack.c.l.b16 %v208
    %v245 = vunpack.c.l.b16 %v209
    %v246 = vunpack.c.l.b16 %v210
    %v247 = vunpack.c.l.b16 %v211
    %v248 = vunpack.c.l.b16 %v212
    %v249 = vunpack.c.l.b16 %v213
    %v250 = vunpack.c.l.b16 %v214
    %v251 = vunpack.c.l.b16 %v215
    %v252 = vunpack.c.l.b16 %v216
    %v253 = vunpack.c.l.b16 %v217
    %v254 = vunpack.c.l.b16 %v218
    %v255 = vunpack.c.l.b16 %v219
    %v256 = vpack.c.b16 %v241, %v240
    %v257 = vpack.c.b16 %v243, %v242
    %v258 = vpack.c.b16 %v245, %v244
    %v259 = vpack.c.b16 %v247, %v246
    %v260 = vpack.c.b16 %v249, %v248
    %v261 = vpack.c.b16 %v251, %v250
    %v262 = vpack.c.b16 %v253, %v252
    %v263 = vpack.c.b16 %v255, %v254
    %272 = vmatpush.bf16.msra.mxu0 %v263
    %273 = vmatpush.bf16.msra.mxu0 %v262
    %274 = vmatpush.bf16.msra.mxu0 %v261
    %275 = vmatpush.bf16.msra.mxu0 %v260
    %276 = vmatpush.bf16.msra.mxu0 %v259
    %277 = vmatpush.bf16.msra.mxu0 %v258
    %278 = vmatpush.bf16.msra.mxu0 %v257
    %279 = vmatpush.bf16.msra.mxu0 %v256
    %280 = vmatmul.bf16.gmra.mxu0 %v203
    %v281 = vpop.f32.mrf.mxu0
    %v282 = vadd.f32 %v222, %v281
    %v283 = vpop.f32.mrf.mxu0
    %v284 = vadd.f32 %v222, %v283
    %285 = vdwg.mxu0
    %v286 = vpack.c.bf16 %v282, %v282
    %v287 = vpack.c.bf16 %v284, %v284
    %288 = vst [vmem:[#allocation2] sm:$0xf] %v286
    %289 = vst [vmem:[#allocation2 + $0x4] sm:$0xf] %v287
    // Predicated region
    $region30: #{password_decoder_forward.1} parent=1 // pred_check
      _
    $region31: #{password_decoder_forward.1} parent=1 // pred_check_branch
      %291 = sbr.rel (0) target = $region33
    $region32: #{password_decoder_forward.1} parent=1 // pred_region
      // Predicated region
      $region34: #{password_decoder_forward.1} parent=32 // pred_check
        _
      $region35: #{password_decoder_forward.1} parent=32 // pred_check_branch
        %293 = sbr.rel (0) target = $region37
      $region36: #{password_decoder_forward.1} parent=32 // pred_region
        // Predicated region
        $region38: #{password_decoder_forward.1} parent=36 // pred_check
          _
        $region39: #{password_decoder_forward.1} parent=36 // pred_check_branch
          %295 = sbr.rel target = $region41
        $region40: #{password_decoder_forward.1} parent=36 // pred_region
          // Predicated region
          $region53: #{password_decoder_forward.1} parent=40 // pred_check
            _
          $region54: #{password_decoder_forward.1} parent=40 // pred_check_branch
            %311 = sbr.rel (0) target = $region56
          $region55: #{password_decoder_forward.1} parent=40 // pred_region
            %s313 = ssub.s32 16, 1
            loop: start=0, step=1, limit=1
            $region57: #{password_decoder_forward.1} parent=55 // loop_pre_header
              _
            $region58: #{password_decoder_forward.1} parent=55 // loop_header
              %s315 = sphi 0, %s319
              %p316 = scmp.ge.s32.totalorder %s315, 1
              %s320 = sphi [#allocation2], [#allocation2]
              %s321 = sphi %s7, %s7
            $region59: #{password_decoder_forward.1} parent=55 // loop_header_branch
              %318 = sbr.rel (%p316) target = $region63
            $region60: #{password_decoder_forward.1} parent=55 // loop_body
              %v322 = vld [vmem:[%s320] sm:%s313]
              %323 = vst [vmem:[%s321] sm:%s313] %v322
            $region61: #{password_decoder_forward.1} parent=55 // loop_footer
              %s319 = sadd.s32 1, %s315
            $region62: #{password_decoder_forward.1} parent=55 // loop_footer_branch
              %314 = sbr.rel target = $region58
            $region63: #{password_decoder_forward.1} parent=55 // loop_exit
              _
          $region56: #{password_decoder_forward.1} parent=40 // pred_fallthru
            _
        $region41: #{password_decoder_forward.1} parent=36 // pred_fallthru
          _
        // Predicated region
        $region42: #{password_decoder_forward.1} parent=36 // pred_check
          _
        $region43: #{password_decoder_forward.1} parent=36 // pred_check_branch
          %297 = sbr.rel (0) target = $region45
        $region44: #{password_decoder_forward.1} parent=36 // pred_region
          %s299 = ssub.s32 16, 1
          loop: start=0, step=1, limit=1
          $region46: #{password_decoder_forward.1} parent=44 // loop_pre_header
            _
          $region47: #{password_decoder_forward.1} parent=44 // loop_header
            %s301 = sphi 0, %s305
            %p302 = scmp.ge.s32.totalorder %s301, 1
            %s306 = sphi [#allocation2], [#allocation2]
            %s307 = sphi %s7, %s7
          $region48: #{password_decoder_forward.1} parent=44 // loop_header_branch
            %304 = sbr.rel (%p302) target = $region52
          $region49: #{password_decoder_forward.1} parent=44 // loop_body
            %v308 = vld [vmem:[%s306] sm:%s299]
            %309 = vst [vmem:[%s307] sm:%s299] %v308
          $region50: #{password_decoder_forward.1} parent=44 // loop_footer
            %s305 = sadd.s32 1, %s301
          $region51: #{password_decoder_forward.1} parent=44 // loop_footer_branch
            %300 = sbr.rel target = $region47
          $region52: #{password_decoder_forward.1} parent=44 // loop_exit
            _
        $region45: #{password_decoder_forward.1} parent=36 // pred_fallthru
          _
      $region37: #{password_decoder_forward.1} parent=32 // pred_fallthru
        _
      %324 = vnop
    $region33: #{password_decoder_forward.1} parent=1 // pred_fallthru
      _
    // Predicated region
    $region64: #{password_decoder_forward.1} parent=1 // pred_check
      _
    $region65: #{password_decoder_forward.1} parent=1 // pred_check_branch
      %326 = sbr.rel (0) target = $region67
    $region66: #{password_decoder_forward.1} parent=1 // pred_region
      _
    $region67: #{password_decoder_forward.1} parent=1 // pred_fallthru
      _

</llo_original>
